<compile_context>
chip_gen: v7x
topology: tpu7x:2x2x1
jax: 0.10.0
libtpu: 0.0.40
codegen_flags: <defaults>
</compile_context>

<pallas_src>
import functools

import jax
import jax.numpy as jnp
from jax import lax
from jax.experimental import pallas as pl
from jax.experimental.pallas import tpu as pltpu


GAMMA = 2.0  # matches FocalLoss(gamma=2.0); alpha=None, reduction='mean'

_DEFAULT_CHUNK_ROWS = 256              # rows per in-kernel loop step
_TARGET_BLOCK_BYTES = 4 * 1024 * 1024  # ~4 MiB of logits per grid step


def _round_up(x, m):
    return ((x + m - 1) // m) * m


def _sublane_align(dtype):
    # minimum sublane multiple for a (rows, C) VMEM tile of this dtype
    return {4: 8, 2: 16, 1: 32}.get(jnp.dtype(dtype).itemsize, 8)


def _focal_loss_kernel(logits_ref, targets_ref, out_ref, *,
                       n_total, block_rows, chunk_rows):
    # logits_ref : (block_rows, C)            f32 or bf16 block
    # targets_ref: (1, n_chunks, chunk_rows)  int32, lane-dense
    # out_ref    : (1, 1, 1) f32              per-block partial sum
    block_idx = pl.program_id(0)
    n_chunks = block_rows // chunk_rows
    c = logits_ref.shape[-1]

    def chunk_body(j, acc):
        r0 = pl.multiple_of(j * chunk_rows, chunk_rows)
        x = logits_ref[pl.ds(r0, chunk_rows), :].astype(jnp.float32)   # (chunk, C)

        # Scrub padded rows BEFORE the exp/log chain (ragged last block may
        # contain garbage in the Pallas pad region).
        row_ids = (block_idx * block_rows + r0 +
                   lax.broadcasted_iota(jnp.int32, (chunk_rows, 1), 0))
        valid = row_ids < n_total                                       # (chunk, 1)
        x = jnp.where(valid, x, 0.0)

        # Targets for this chunk: lane-dense load, tiny lane->sublane relayout.
        t_lane = targets_ref[0, pl.ds(j, 1), :]                          # (1, chunk)
        t_col = t_lane.reshape(chunk_rows, 1)                            # (chunk, 1)

        # Numerically-stable cross entropy; exp(z) reused for pt.
        m = jnp.max(x, axis=-1, keepdims=True)
        z = x - m
        e = jnp.exp(z)
        sum_e = jnp.sum(e, axis=-1, keepdims=True)

        onehot = lax.broadcasted_iota(jnp.int32, (chunk_rows, c), 1) == t_col
        tgt_z = jnp.sum(jnp.where(onehot, z, 0.0), axis=-1, keepdims=True)
        tgt_e = jnp.sum(jnp.where(onehot, e, 0.0), axis=-1, keepdims=True)

        ce = jnp.log(sum_e) - tgt_z              # F.cross_entropy(reduction='none')
        pt = jnp.maximum(tgt_e / sum_e, 1e-8)    # == exp(-ce); pt <= 1, no upper clamp
        omp = 1.0 - pt
        focal = omp * omp * ce                   # gamma == 2 -> single VPU square
        focal = jnp.where(valid, focal, 0.0)
        return acc + jnp.sum(focal, axis=0, keepdims=True)               # (1, 1)

    total = lax.fori_loop(0, n_chunks, chunk_body,
                          jnp.zeros((1, 1), jnp.float32))
    out_ref[0] = total


def focal_loss(logits, targets, *, block_rows=None, chunk_rows=_DEFAULT_CHUNK_ROWS):
    """Mean focal loss (alpha=None, gamma=2.0) over (N, C) logits, (N,) int targets."""
    n, c = logits.shape
    itemsize = jnp.dtype(logits.dtype).itemsize
    align = _sublane_align(logits.dtype)

    # Inner chunk bounds live f32 intermediates; keep it a sublane-tile multiple.
    chunk_rows = _round_up(max(align, min(chunk_rows, _round_up(n, align))), align)

    # Outer block (one grid step) sized in bytes so the HBM->VMEM DMA per step
    # dwarfs the per-grid-step overhead; a multiple of chunk_rows; <= padded N.
    if block_rows is None:
        block_rows = max(chunk_rows, _TARGET_BLOCK_BYTES // max(1, c * itemsize))
    block_rows = _round_up(
        max(chunk_rows, min(block_rows, _round_up(n, chunk_rows))), chunk_rows)
    n_chunks = block_rows // chunk_rows
    num_blocks = pl.cdiv(n, block_rows)

    # Lane-dense targets: one contiguous int32 DMA per block, no 128x lane pad.
    padded_rows = num_blocks * block_rows
    t3 = jnp.pad(targets.astype(jnp.int32), (0, padded_rows - n)).reshape(
        num_blocks, n_chunks, chunk_rows)

    kernel = functools.partial(_focal_loss_kernel, n_total=n,
                               block_rows=block_rows, chunk_rows=chunk_rows)

    # Explicit scoped-VMEM budget: double-buffered blocks + chunk-scratch margin.
    logits_block = block_rows * c * itemsize
    targets_block = _round_up(n_chunks, 8) * chunk_rows * 4
    vmem_limit = int(min(48 * 2**20,
                         max(32 * 2**20,
                             2 * (logits_block + targets_block) + 8 * 2**20)))

    partials = pl.pallas_call(
        kernel,
        out_shape=jax.ShapeDtypeStruct((num_blocks, 1, 1), jnp.float32),
        grid_spec=pltpu.PrefetchScalarGridSpec(
            num_scalar_prefetch=0,
            grid=(num_blocks,),
            in_specs=[
                pl.BlockSpec((block_rows, c), lambda i: (i, 0)),
                pl.BlockSpec((1, n_chunks, chunk_rows), lambda i: (i, 0, 0)),
            ],
            out_specs=pl.BlockSpec((1, 1, 1), lambda i: (i, 0, 0)),
        ),
        compiler_params=pltpu.CompilerParams(
            # Independent per-block partial sums -> parallel axis (both TCs on v7x).
            dimension_semantics=("parallel",),
            vmem_limit_bytes=vmem_limit,
        ),
    )(logits, t3)

    # Final mean in JAX: better accumulation order than one serial scalar chain.
    return jnp.sum(partials) / jnp.float32(n)


def _reference_focal_loss(logits, targets):
    # Pure-JAX reference mirroring torch F.cross_entropy + focal modulation.
    logp = jax.nn.log_softmax(logits.astype(jnp.float32), axis=-1)
    ce = -jnp.take_along_axis(logp, targets[:, None].astype(jnp.int32), axis=-1)[:, 0]
    pt = jnp.clip(jnp.exp(-ce), 1e-08, 1.0)
    return jnp.mean((1.0 - pt) ** GAMMA * ce)


if __name__ == "__main__":
    key = jax.random.PRNGKey(0)
    k_logits, k_targets = jax.random.split(key)

    # Small shapes consistent with the module: a batch of 8 graphs, 32 classes.
    N, C = 8, 32
    logits = jax.random.normal(k_logits, (N, C), dtype=jnp.float32)
    targets = jax.random.randint(k_targets, (N,), 0, C, dtype=jnp.int32)

    loss = focal_loss(logits, targets)
    jax.block_until_ready(loss)
    ref = _reference_focal_loss(logits, targets)
    assert jnp.allclose(loss, ref, rtol=1e-5, atol=1e-5), (loss, ref)

    # Ragged N + multi-block grid + multi-chunk inner loop (masked tail rows).
    N2, C2 = 300, 32
    k1, k2 = jax.random.split(k_targets)
    logits2 = jax.random.normal(k1, (N2, C2), dtype=jnp.float32)
    targets2 = jax.random.randint(k2, (N2,), 0, C2, dtype=jnp.int32)
    loss2 = focal_loss(logits2, targets2, block_rows=128, chunk_rows=64)
    jax.block_until_ready(loss2)
    ref2 = _reference_focal_loss(logits2, targets2)
    assert jnp.allclose(loss2, ref2, rtol=1e-5, atol=1e-5), (loss2, ref2)

    # Default byte-targeted autosizing on the same ragged input.
    loss3 = focal_loss(logits2, targets2)
    jax.block_until_ready(loss3)
    assert jnp.allclose(loss3, ref2, rtol=1e-5, atol=1e-5), (loss3, ref2)

    # Optional bf16 logits path (halves HBM reads; f32 math inside the kernel).
    logits_bf16 = logits2.astype(jnp.bfloat16)
    loss4 = focal_loss(logits_bf16, targets2)
    jax.block_until_ready(loss4)
    ref4 = _reference_focal_loss(logits_bf16.astype(jnp.float32), targets2)
    assert jnp.allclose(loss4, ref4, rtol=1e-5, atol=1e-5), (loss4, ref4)

    # TODO(synk): alpha (per-class weights) and reduction='sum'/'none' variants
    # of the module are not implemented; defaults (None, 2.0, 'mean') are.
    print("KERNEL_OK")
</pallas_src>

<mosaic_0001>
module attributes {stable_mosaic.version = 11 : i64} {
  func.func @_focal_loss_kernel(%arg0: i32, %arg1: memref<8x32xf32, #tpu.memory_space<vmem>>, %arg2: memref<1x1x8xi32, #tpu.memory_space<vmem>>, %arg3: memref<1x1x1xf32, #tpu.memory_space<vmem>>) attributes {dimension_semantics = [#tpu.dimension_semantics<parallel>], iteration_bounds = array<i64: 1>, scalar_prefetch = 0 : i64, scratch_operands = 0 : i64, tpu.core_type = #tpu.core_type<tc>, window_params = [{transform_indices = @transform_0, window_bounds = array<i64: 8, 32>}, {transform_indices = @transform_1, window_bounds = array<i64: 1, 1, 8>}, {transform_indices = @transform_2, window_bounds = array<i64: 1, 1, 1>}]} {
    %cst = arith.constant 0.000000e+00 : f32
    %0 = vector.broadcast %cst : f32 to vector<1x1xf32>
    %c0_i32 = arith.constant 0 : i32
    %c8_i32 = arith.constant 8 : i32
    %1 = arith.muli %c0_i32, %c8_i32 : i32
    %2 = tpu.assume_multiple %1, 8 : i32
    %3 = arith.index_cast %2 : i32 to index
    %c0 = arith.constant 0 : index
    %4 = vector.load %arg1[%3, %c0] : memref<8x32xf32, #tpu.memory_space<vmem>>, vector<8x32xf32>
    %c8_i32_0 = arith.constant 8 : i32
    %5 = arith.muli %arg0, %c8_i32_0 : i32
    %6 = arith.addi %5, %2 : i32
    %7 = tpu.iota {dimensions = array<i32: 0>} : vector<8x1xi32>
    %8 = vector.broadcast %6 : i32 to vector<8x1xi32>
    %9 = arith.addi %8, %7 : vector<8x1xi32>
    %c8_i32_1 = arith.constant 8 : i32
    %10 = vector.broadcast %c8_i32_1 : i32 to vector<8x1xi32>
    %11 = arith.cmpi slt, %9, %10 : vector<8x1xi32>
    %cst_2 = arith.constant 0.000000e+00 : f32
    %12 = vector.shape_cast %11 : vector<8x1xi1> to vector<8x1xi1>
    %13 = vector.broadcast %12 : vector<8x1xi1> to vector<8x32xi1>
    %14 = vector.broadcast %cst_2 : f32 to vector<8x32xf32>
    %15 = arith.select %13, %4, %14 : vector<8x32xi1>, vector<8x32xf32>
    %c0_3 = arith.constant 0 : index
    %16 = arith.index_cast %c0_i32 : i32 to index
    %c0_4 = arith.constant 0 : index
    %17 = vector.load %arg2[%c0_3, %16, %c0_4] : memref<1x1x8xi32, #tpu.memory_space<vmem>>, vector<1x1x8xi32>
    %18 = vector.shape_cast %17 : vector<1x1x8xi32> to vector<1x8xi32>
    %19 = vector.shape_cast %18 : vector<1x8xi32> to vector<8x1xi32>
    %cst_5 = arith.constant dense<0xFF800000> : vector<8xf32>
    %20 = vector.multi_reduction <maximumf>, %15, %cst_5 [1] : vector<8x32xf32> to vector<8xf32>
    %21 = vector.shape_cast %20 : vector<8xf32> to vector<8x1xf32>
    %22 = vector.broadcast %21 : vector<8x1xf32> to vector<8x32xf32>
    %23 = arith.subf %15, %22 : vector<8x32xf32>
    %24 = math.exp %23 : vector<8x32xf32>
    %cst_6 = arith.constant dense<0.000000e+00> : vector<8xf32>
    %25 = vector.multi_reduction <add>, %24, %cst_6 [1] : vector<8x32xf32> to vector<8xf32>
    %26 = vector.shape_cast %25 : vector<8xf32> to vector<8x1xf32>
    %27 = tpu.iota {dimensions = array<i32: 1>} : vector<8x32xi32>
    %28 = vector.broadcast %19 : vector<8x1xi32> to vector<8x32xi32>
    %29 = arith.cmpi eq, %27, %28 : vector<8x32xi32>
    %cst_7 = arith.constant 0.000000e+00 : f32
    %30 = vector.broadcast %cst_7 : f32 to vector<8x32xf32>
    %31 = arith.select %29, %23, %30 : vector<8x32xi1>, vector<8x32xf32>
    %cst_8 = arith.constant dense<0.000000e+00> : vector<8xf32>
    %32 = vector.multi_reduction <add>, %31, %cst_8 [1] : vector<8x32xf32> to vector<8xf32>
    %33 = vector.shape_cast %32 : vector<8xf32> to vector<8x1xf32>
    %cst_9 = arith.constant 0.000000e+00 : f32
    %34 = vector.broadcast %cst_9 : f32 to vector<8x32xf32>
    %35 = arith.select %29, %24, %34 : vector<8x32xi1>, vector<8x32xf32>
    %cst_10 = arith.constant dense<0.000000e+00> : vector<8xf32>
    %36 = vector.multi_reduction <add>, %35, %cst_10 [1] : vector<8x32xf32> to vector<8xf32>
    %37 = vector.shape_cast %36 : vector<8xf32> to vector<8x1xf32>
    %38 = math.log %26 : vector<8x1xf32>
    %39 = arith.subf %38, %33 : vector<8x1xf32>
    %40 = arith.divf %37, %26 : vector<8x1xf32>
    %cst_11 = arith.constant 9.99999993E-9 : f32
    %41 = vector.broadcast %cst_11 : f32 to vector<8x1xf32>
    %42 = arith.maximumf %40, %41 : vector<8x1xf32>
    %cst_12 = arith.constant 1.000000e+00 : f32
    %43 = vector.broadcast %cst_12 : f32 to vector<8x1xf32>
    %44 = arith.subf %43, %42 : vector<8x1xf32>
    %45 = arith.mulf %44, %44 : vector<8x1xf32>
    %46 = arith.mulf %45, %39 : vector<8x1xf32>
    %cst_13 = arith.constant 0.000000e+00 : f32
    %47 = vector.broadcast %cst_13 : f32 to vector<8x1xf32>
    %48 = arith.select %11, %46, %47 : vector<8x1xi1>, vector<8x1xf32>
    %cst_14 = arith.constant dense<0.000000e+00> : vector<1xf32>
    %49 = vector.multi_reduction <add>, %48, %cst_14 [0] : vector<8x1xf32> to vector<1xf32>
    %50 = vector.shape_cast %49 : vector<1xf32> to vector<1x1xf32>
    %51 = arith.addf %0, %50 : vector<1x1xf32>
    %c1_i32 = arith.constant 1 : i32
    %c0_15 = arith.constant 0 : index
    %c0_16 = arith.constant 0 : index
    %c0_17 = arith.constant 0 : index
    %52 = vector.load %arg3[%c0_15, %c0_16, %c0_17] : memref<1x1x1xf32, #tpu.memory_space<vmem>>, vector<1x1x1xf32>
    %53 = vector.shape_cast %52 : vector<1x1x1xf32> to vector<1x1xf32>
    %54 = vector.shape_cast %51 : vector<1x1xf32> to vector<1x1x1xf32>
    tpu.vector_store %arg3[%c0_15, %c0_16, %c0_17], %54 {strides = array<i32>} : memref<1x1x1xf32, #tpu.memory_space<vmem>>, vector<1x1x1xf32>,
    return
  }
  func.func @transform_0(%arg0: i32) -> (i32, i32) {
    %c0_i32 = arith.constant 0 : i32
    %c0_i32_0 = arith.constant 0 : i32
    return %arg0, %c0_i32 : i32, i32
  }
  func.func @transform_1(%arg0: i32) -> (i32, i32, i32) {
    %c0_i32 = arith.constant 0 : i32
    %c0_i32_0 = arith.constant 0 : i32
    %c0_i32_1 = arith.constant 0 : i32
    return %arg0, %c0_i32, %c0_i32_0 : i32, i32, i32
  }
  func.func @transform_2(%arg0: i32) -> (i32, i32, i32) {
    %c0_i32 = arith.constant 0 : i32
    %c0_i32_0 = arith.constant 0 : i32
    %c0_i32_1 = arith.constant 0 : i32
    return %arg0, %c0_i32, %c0_i32_0 : i32, i32, i32
  }
}

</mosaic_0001>

<llo_original>
// kernel: tpu_custom_call.1
$region0: #{tpu_custom_call.1}
  #allocation0 [shape = 'u32[]', space=smem, size = 0x4, offset = 0x4, fixed_abs, tag = 'smem constant byte address 0x4 - core index']
  #allocation1 [shape = 'u32[144,128]{1,0:T(1,128)}', space=vmem, size = 0x12000, scoped, tag = 'internal scratch']
  %s0 = inlined_call_operand.hbm [shape: f32[8,32], index: 0, kind: input, shape index: {}]
  %s1 = inlined_call_operand.vmem [shape: s32[1,1,8], index: 1, kind: input, shape index: {}]
  %s2 = inlined_call_operand.hbm [shape: f32[1,1,1], index: 2, kind: output, shape index: {}]
  %s3 = sld [smem:[#allocation0]]
  $region22: #{tpu_custom_call.1} parent=0
    _
  %s5 = ssub.s32 1, %s3
  %s6 = scalar_select 0, %s5, %s3
  $region1: #{tpu_custom_call.1} parent=0
    #allocation2 [shape = 'u8[4096]{0}', space=vmem, size = 0x1000, scoped, tag = 'input window, operand 0, single buffered']
    #allocation3 [shape = 's32[1]{0}', space=sflag, size = 0x4, scoped, tag = 'scoped memory for tpu_custom_call.1']
    #allocation4 [shape = 's32[1]{0}', space=sflag, size = 0x4, scoped, tag = 'scoped memory for tpu_custom_call.1']
    #allocation5 [shape = 'u8[512]{0}', space=vmem, size = 0x400, scoped, tag = 'output window, operand 0, single buffered']
    %7 = vsyncpa [#allocation3], 0
    %8 = vsyncpa [#allocation4], 0
    // Predicated region
    $region2: #{tpu_custom_call.1} parent=1 // pred_check
      _
    $region3: #{tpu_custom_call.1} parent=1 // pred_check_branch
      %10 = sbr.rel (0) target = $region5
    $region4: #{tpu_custom_call.1} parent=1 // pred_region
      %s12 = ssub.s32 128, 128
      %13 = vsyncadd [#allocation3], %s12
      %s15 = sshll.u32 [#allocation2], 4
      %s16 = int_to_ptr.vmem [resolvable:$true] %s15
      %18 = dma.hbm_to_vmem [thread:$0]  %s0, 128, %s16, [#allocation3]
    $region5: #{tpu_custom_call.1} parent=1 // pred_fallthru
      _
    // Predicated region
    $region6: #{tpu_custom_call.1} parent=1 // pred_check
      _
    $region7: #{tpu_custom_call.1} parent=1 // pred_check_branch
      %20 = sbr.rel (0) target = $region9
    $region8: #{tpu_custom_call.1} parent=1 // pred_region
      _
    $region9: #{tpu_custom_call.1} parent=1 // pred_fallthru
      _
    // Predicated region
    $region10: #{tpu_custom_call.1} parent=1 // pred_check
      _
    $region11: #{tpu_custom_call.1} parent=1 // pred_check_branch
      %22 = sbr.rel (0) target = $region13
    $region12: #{tpu_custom_call.1} parent=1 // pred_region
      %23 = dma.done [#allocation3], 128
    $region13: #{tpu_custom_call.1} parent=1 // pred_fallthru
      _
    %v24 = vld [vmem:[#allocation2] sm:$0xff]
    %s25 = smul.u32 0, 8
    %s26 = sadd.s32 %s25, 0
    %v27 = vlaneseq
    %v28 = vshrl.u32 %v27, 7
    %v29 = vstv %s26
    %v30 = vadd.s32 %v29, %v28
    %vm31 = vcmp.lt.s32.totalorder %v30, 8
    %v32 = vsel %vm31, 1, 0
    %vm33 = vcmp.eq.s32.totalorder %v32, 1
    %v34 = vsel %vm33, %v24, 0.0
    %v35 = vld [vmem:[%s1] sm:$0x1]
    %v36 = vlaneseq
    %v37 = vshrl.u32 %v36, 7
    %v38 = vsub.s32 0, %v37
    %v39 = vrot.slane %v35, %v38
    %41 = vbcast.lane.b32.xlu0 %v39, 256
    %v42 = vpop.permute.xlu0 %41
    %vm43 = vcmask 261120
    %v44 = vsel %vm43, %v34, -inf
    %45 = vmax.xlane.f32.xlu0 %v44
    %v46 = vpop.xlane.xlu0 %45
    %v47 = vsub.f32 %v34, %v46
    %v48 = vmul.f32 %v47, 1.442695
    %v49 = vpow.pop %v48
    %v50 = vsel %vm43, %v49, 0.0
    %51 = vadd.xlane.f32.xlu0 %v50
    %v52 = vpop.xlane.xlu0 %51
    %v53 = vlaneseq
    %v54 = vand.u32 %v53, 127
    %vm55 = vcmp.eq.s32.totalorder %v54, %v42
    %v56 = vsel %vm55, %v47, 0.0
    %v57 = vsel %vm43, %v56, 0.0
    %58 = vadd.xlane.f32.xlu0 %v57
    %v59 = vpop.xlane.xlu0 %58
    %v60 = vsel %vm55, %v49, 0.0
    %v61 = vsel %vm43, %v60, 0.0
    %62 = vadd.xlane.f32.xlu0 %v61
    %v63 = vpop.xlane.xlu0 %62
    %v64 = vlog2.pop %v52
    %v65 = vmul.f32 %v64, 0.6931472
    %v66 = vsub.f32 %v65, %v59
    %v67 = vrcp.pop %v52
    %v68 = vmul.f32 %v63, %v67
    %v69 = vmax.f32 %v68, 1e-08
    %v70 = vsub.f32 1.0, %v69
    %v71 = vmul.f32 %v70, %v70
    %v72 = vmul.f32 %v71, %v66
    %v73 = vsel %vm31, %v72, 0.0
    %v74 = vrot.slane %v73, 4
    %v75 = vadd.f32 %v73, %v74
    %v76 = vrot.slane %v75, 2
    %v77 = vadd.f32 %v75, %v76
    %v78 = vrot.slane %v77, 1
    %v79 = vadd.f32 %v77, %v78
    %v80 = vadd.f32 %v79, 0.0
    %vm81 = vcmask 0
    %82 = vst.msk [vmem:[#allocation5] sm:$0x1] %vm81, %v80
    // Predicated region
    $region14: #{tpu_custom_call.1} parent=1 // pred_check
      _
    $region15: #{tpu_custom_call.1} parent=1 // pred_check_branch
      %84 = sbr.rel (0) target = $region17
    $region16: #{tpu_custom_call.1} parent=1 // pred_region
      %s86 = ssub.s32 16, 16
      %87 = vsyncadd [#allocation4], %s86
      %s89 = sshll.u32 [#allocation5], 4
      %s90 = int_to_ptr.vmem [resolvable:$true] %s89
      %92 = dma.vmem_to_hbm [thread:$0]  %s90, 16, %s2, [#allocation4]
    $region17: #{tpu_custom_call.1} parent=1 // pred_fallthru
      _
    // Predicated region
    $region18: #{tpu_custom_call.1} parent=1 // pred_check
      _
    $region19: #{tpu_custom_call.1} parent=1 // pred_check_branch
      %94 = sbr.rel (0) target = $region21
    $region20: #{tpu_custom_call.1} parent=1 // pred_region
      %95 = dma.done [#allocation4], 16
    $region21: #{tpu_custom_call.1} parent=1 // pred_fallthru
      _
    %96 = vsyncpa [#allocation3], 1
    %97 = vsyncpa [#allocation4], 1

</llo_original>
